<compile_context>
chip_gen: v7x
topology: tpu7x:2x2x1
jax: 0.10.0
libtpu: 0.0.40
codegen_flags: <defaults>
</compile_context>

<pallas_src>
import functools

import jax
import jax.numpy as jnp
from jax.experimental import pallas as pl
from jax.experimental.pallas import tpu as pltpu


# ---------------------------------------------------------------------------
# Kernels
# ---------------------------------------------------------------------------

def _pose_kernel(x_ref, w_ref, b_ref, o_ref, *, tile_b, n_pad):
    # x_ref: (tile_b, K, tile_t)   w_ref: (K, n_pad)   b_ref: (1, n_pad)
    # o_ref: (tile_t, tile_b * n_pad)
    tile_t = x_ref.shape[-1]
    w = w_ref[...]
    bias = jnp.broadcast_to(b_ref[...], (tile_t, n_pad))        # hoisted once
    for b in range(tile_b):                                      # static unroll
        # Contract K directly (sublane axis) -- no in-VMEM transpose.
        y = jax.lax.dot_general(x_ref[b], w, (((0,), (0,)), ((), ())),
                                preferred_element_type=jnp.float32)
        o_ref[:, b * n_pad:(b + 1) * n_pad] = (y + bias).astype(o_ref.dtype)


def _rot_vel_kernel(x_ref, wp_ref, bp_ref, wv_ref, bv_ref, o_ref, *,
                    tile_b, n_pad):
    # Velocity embedding for every frame; pose embedding only for frame 0,
    # fixed up below on the first frame tile only.
    tile_t = x_ref.shape[-1]
    wv = wv_ref[...]
    bias_v = jnp.broadcast_to(bv_ref[...], (tile_t, n_pad))      # hoisted once
    for b in range(tile_b):
        y = jax.lax.dot_general(x_ref[b], wv, (((0,), (0,)), ((), ())),
                                preferred_element_type=jnp.float32)
        o_ref[:, b * n_pad:(b + 1) * n_pad] = (y + bias_v).astype(o_ref.dtype)

    # Only the first frame tile can contain global frame 0.  Every other grid
    # step pays nothing for the pose path.
    @pl.when(pl.program_id(0) == 0)
    def _():
        wp = wp_ref[...]
        bp = bp_ref[...]
        for b in range(tile_b):
            # Tiny (<=8, K) @ (K, n_pad) matmul; only row 0 is kept.
            x8 = x_ref[b][:, 0:8]                                # (K, <=8)
            y8 = jax.lax.dot_general(x8, wp, (((0,), (0,)), ((), ())),
                                     preferred_element_type=jnp.float32)
            o_ref[0:1, b * n_pad:(b + 1) * n_pad] = (
                y8[0:1] + bp).astype(o_ref.dtype)


# ---------------------------------------------------------------------------
# Tiling / wrapper helpers
# ---------------------------------------------------------------------------

def _round_up(x, m):
    return (x + m - 1) // m * m


def _pad_last(a, n_pad):
    n = a.shape[-1]
    if n == n_pad:
        return a
    pad = [(0, 0)] * (a.ndim - 1) + [(0, n_pad - n)]
    return jnp.pad(a, pad)


def _choose_tiles(bs, k_dim, nframes, n_pad, n_mats, x_itemsize, tile_t_target):
    # Frame tile: last dim of the x block must be a multiple of 128 or the
    # full frame extent.
    if nframes % 128 == 0:
        tile_t = min(nframes, tile_t_target)
    elif nframes <= max(tile_t_target, 512):
        tile_t = nframes
    else:
        tile_t = tile_t_target            # ragged last tile is masked by Pallas

    # Batch tile: largest divisor of bs that is <= 8 (avoids ragged batch
    # tiles doing padded matmuls / fully-masked stores).
    tile_b = 1
    for d in range(min(bs, 8), 0, -1):
        if bs % d == 0:
            tile_b = d
            break

    # Fit the double-buffered footprint in a conservative VMEM budget
    # (safe for v7x's 64 MiB physical VMEM; generous on v5e/v6e's 128 MiB).
    def footprint(tt, tb):
        x_blk = tb * k_dim * tt * x_itemsize
        o_blk = tt * tb * n_pad * 4
        w_b = n_mats * (k_dim + 1) * n_pad * 4
        return 2 * (x_blk + o_blk) + 2 * w_b

    budget = 44 << 20
    while footprint(tile_t, tile_b) > budget and tile_t % 256 == 0:
        tile_t //= 2
    while footprint(tile_t, tile_b) > budget and tile_b > 1:
        tile_b = max(1, tile_b // 2)      # may leave one ragged batch tile

    # Make sure both v7x TensorCores get work when the problem allows it.
    if pl.cdiv(nframes, tile_t) * pl.cdiv(bs, tile_b) == 1:
        if tile_t % 256 == 0:
            tile_t //= 2
        elif tile_b > 1:
            new_tb = 1
            for d in range(tile_b // 2, 0, -1):
                if bs % d == 0:
                    new_tb = d
                    break
            tile_b = new_tb

    return tile_t, tile_b, footprint(tile_t, tile_b)


def input_process_forward(x3, pose_w, pose_b, vel_w=None, vel_b=None,
                          *, mxu_dtype=None, tile_t_target=512):
    """x3: (bs, K, nframes); *_w: (K, N); *_b: (N,).  Returns (nframes, bs, N)."""
    bs, k_dim, nframes = x3.shape
    n = pose_w.shape[1]
    n_pad = _round_up(n, 128)
    out_dtype = x3.dtype
    rot_vel = vel_w is not None
    n_mats = 2 if rot_vel else 1

    # Optional bf16 MXU feed (halves the x HBM stream; accumulate stays f32,
    # bias add and output stay f32 to match torch semantics closely).
    if mxu_dtype is not None:
        x3 = x3.astype(mxu_dtype)
        pose_w = pose_w.astype(mxu_dtype)
        if rot_vel:
            vel_w = vel_w.astype(mxu_dtype)

    wp = _pad_last(pose_w, n_pad)
    bp = _pad_last(pose_b.reshape(1, n).astype(jnp.float32), n_pad)

    tile_t_target = max(128, _round_up(int(tile_t_target), 128))
    tile_t, tile_b, fp = _choose_tiles(
        bs, k_dim, nframes, n_pad, n_mats,
        jnp.dtype(x3.dtype).itemsize, tile_t_target)
    grid = (pl.cdiv(nframes, tile_t), pl.cdiv(bs, tile_b))

    x_spec = pl.BlockSpec((tile_b, k_dim, tile_t), lambda t, b: (b, 0, t))
    w_spec = pl.BlockSpec((k_dim, n_pad), lambda t, b: (0, 0))
    bias_spec = pl.BlockSpec((1, n_pad), lambda t, b: (0, 0))
    out_spec = pl.BlockSpec((tile_t, tile_b * n_pad), lambda t, b: (t, b))

    out_itemsize = jnp.dtype(out_dtype).itemsize
    cost = pl.CostEstimate(
        flops=2 * nframes * bs * k_dim * n_pad,
        transcendentals=0,
        bytes_accessed=(jnp.dtype(x3.dtype).itemsize * bs * k_dim * nframes
                        + 4 * n_mats * (k_dim + 1) * n_pad
                        + out_itemsize * nframes * bs * n_pad))

    if rot_vel:
        wv = _pad_last(vel_w, n_pad)
        bv = _pad_last(vel_b.reshape(1, n).astype(jnp.float32), n_pad)
        kernel = functools.partial(_rot_vel_kernel, tile_b=tile_b, n_pad=n_pad)
        in_specs = [x_spec, w_spec, bias_spec, w_spec, bias_spec]
        operands = (x3, wp, bp, wv, bv)
    else:
        kernel = functools.partial(_pose_kernel, tile_b=tile_b, n_pad=n_pad)
        in_specs = [x_spec, w_spec, bias_spec]
        operands = (x3, wp, bp)

    # Explicit VMEM budget: double-buffered blocks + resident weights + slack,
    # clamped so it never exceeds what v7x can physically back.
    vmem_limit = int(min(max(fp + (6 << 20), 32 << 20), 56 << 20))

    out2d = pl.pallas_call(
        kernel,
        out_shape=jax.ShapeDtypeStruct((nframes, bs * n_pad), out_dtype),
        grid_spec=pl.GridSpec(grid=grid, in_specs=in_specs, out_specs=out_spec),
        compiler_params=pltpu.CompilerParams(
            dimension_semantics=("parallel", "parallel"),
            vmem_limit_bytes=vmem_limit),
        cost_estimate=cost,
    )(*operands)

    out = out2d.reshape(nframes, bs, n_pad)        # free: splits the lane dim
    if n_pad != n:
        # Extra HBM copy only when latent_dim % 128 != 0 (production latent=512
        # is already aligned so this branch never runs there).  Consumers that
        # accept the padded layout can take `out2d` directly and skip it.
        out = out[..., :n]
    return out


# ---------------------------------------------------------------------------
# Module
# ---------------------------------------------------------------------------

class InputProcessPallas:
    """JAX/Pallas re-implementation of InputProcess.forward."""

    def __init__(self, data_rep, input_feats, latent_dim, key,
                 use_bf16_mxu=False):
        self.data_rep = data_rep
        self.input_feats = input_feats
        self.latent_dim = latent_dim
        self.use_bf16_mxu = use_bf16_mxu

        k1, k2, k3, k4 = jax.random.split(key, 4)
        # nn.Linear default init: U(-1/sqrt(in), 1/sqrt(in)) for weight & bias.
        bound = 1.0 / (input_feats ** 0.5)
        # Weights stored pre-transposed (K, N) so the kernel computes x @ W^T + b.
        self.pose_w = jax.random.uniform(
            k1, (input_feats, latent_dim), jnp.float32, -bound, bound)
        self.pose_b = jax.random.uniform(
            k2, (latent_dim,), jnp.float32, -bound, bound)
        if data_rep == 'rot_vel':
            self.vel_w = jax.random.uniform(
                k3, (input_feats, latent_dim), jnp.float32, -bound, bound)
            self.vel_b = jax.random.uniform(
                k4, (latent_dim,), jnp.float32, -bound, bound)

    def __call__(self, x):
        bs, njoints, nfeats, nframes = x.shape
        assert njoints * nfeats == self.input_feats
        # Free reshape only -- the permute((3,0,1,2)) is folded into the kernel.
        x3 = x.reshape(bs, self.input_feats, nframes)
        mxu_dtype = jnp.bfloat16 if self.use_bf16_mxu else None
        if self.data_rep in ['rot6d', 'xyz', 'hml_vec']:
            return input_process_forward(x3, self.pose_w, self.pose_b,
                                         mxu_dtype=mxu_dtype)
        elif self.data_rep == 'rot_vel':
            return input_process_forward(x3, self.pose_w, self.pose_b,
                                         self.vel_w, self.vel_b,
                                         mxu_dtype=mxu_dtype)
        else:
            raise ValueError(self.data_rep)


# ---------------------------------------------------------------------------
# Self-test
# ---------------------------------------------------------------------------

if __name__ == "__main__":
    key = jax.random.PRNGKey(0)
    k_x, k_p = jax.random.split(key)

    bs, njoints, nfeats, nframes = 2, 4, 4, 8
    input_feats = njoints * nfeats   # 16
    latent_dim = 32

    x = jax.random.normal(k_x, (bs, njoints, nfeats, nframes), jnp.float32)
    x_perm = jnp.transpose(x, (3, 0, 1, 2)).reshape(nframes, bs, input_feats)

    # --- rot6d / xyz / hml_vec path (f32) ---
    mod = InputProcessPallas('rot6d', input_feats, latent_dim, k_p)
    out = jax.block_until_ready(mod(x))
    assert out.shape == (nframes, bs, latent_dim)
    ref = x_perm @ mod.pose_w + mod.pose_b
    assert jnp.allclose(out, ref, atol=1e-4, rtol=1e-4), \
        float(jnp.max(jnp.abs(out - ref)))

    # --- rot_vel path (fused single pallas_call, pl.when fix-up) ---
    mod_rv = InputProcessPallas('rot_vel', input_feats, latent_dim, k_p)
    out_rv = jax.block_until_ready(mod_rv(x))
    assert out_rv.shape == (nframes, bs, latent_dim)
    ref_rv = jnp.concatenate(
        (x_perm[0:1] @ mod_rv.pose_w + mod_rv.pose_b,
         x_perm[1:] @ mod_rv.vel_w + mod_rv.vel_b), axis=0)
    assert jnp.allclose(out_rv, ref_rv, atol=1e-4, rtol=1e-4), \
        float(jnp.max(jnp.abs(out_rv - ref_rv)))

    # --- bf16 MXU-feed option (looser tolerance vs f32 reference) ---
    mod_bf = InputProcessPallas('rot6d', input_feats, latent_dim, k_p,
                                use_bf16_mxu=True)
    out_bf = jax.block_until_ready(mod_bf(x))
    assert out_bf.shape == (nframes, bs, latent_dim)
    ref_bf = x_perm @ mod_bf.pose_w + mod_bf.pose_b
    assert jnp.allclose(out_bf, ref_bf, atol=5e-2, rtol=5e-2), \
        float(jnp.max(jnp.abs(out_bf - ref_bf)))

    print("KERNEL_OK")
</pallas_src>

<mosaic_0001>
module attributes {stable_mosaic.version = 11 : i64} {
  func.func @_pose_kernel(%arg0: i32, %arg1: i32, %arg2: memref<1x16x8xf32, #tpu.memory_space<vmem>>, %arg3: memref<16x128xf32, #tpu.memory_space<vmem>>, %arg4: memref<1x128xf32, #tpu.memory_space<vmem>>, %arg5: memref<8x128xf32, #tpu.memory_space<vmem>>) attributes {dimension_semantics = [#tpu.dimension_semantics<parallel>, #tpu.dimension_semantics<parallel>], iteration_bounds = array<i64: 1, 2>, scalar_prefetch = 0 : i64, scratch_operands = 0 : i64, tpu.core_type = #tpu.core_type<tc>, window_params = [{transform_indices = @transform_0, window_bounds = array<i64: 1, 16, 8>}, {pipeline_mode = #tpu.pipeline_mode<synchronous>, transform_indices = @transform_1, window_bounds = array<i64: 16, 128>}, {pipeline_mode = #tpu.pipeline_mode<synchronous>, transform_indices = @transform_2, window_bounds = array<i64: 1, 128>}, {transform_indices = @transform_3, window_bounds = array<i64: 8, 128>}]} {
    %c0 = arith.constant 0 : index
    %c0_0 = arith.constant 0 : index
    %0 = vector.load %arg3[%c0, %c0_0] : memref<16x128xf32, #tpu.memory_space<vmem>>, vector<16x128xf32>
    %c0_1 = arith.constant 0 : index
    %c0_2 = arith.constant 0 : index
    %1 = vector.load %arg4[%c0_1, %c0_2] : memref<1x128xf32, #tpu.memory_space<vmem>>, vector<1x128xf32>
    %2 = vector.shape_cast %1 : vector<1x128xf32> to vector<1x128xf32>
    %3 = vector.broadcast %2 : vector<1x128xf32> to vector<8x128xf32>
    %c0_3 = arith.constant 0 : index
    %c0_4 = arith.constant 0 : index
    %c0_5 = arith.constant 0 : index
    %4 = vector.load %arg2[%c0_3, %c0_4, %c0_5] : memref<1x16x8xf32, #tpu.memory_space<vmem>>, vector<1x16x8xf32>
    %5 = vector.shape_cast %4 : vector<1x16x8xf32> to vector<16x8xf32>
    %cst = arith.constant dense<0.000000e+00> : vector<8x128xf32>
    %6 = tpu.matmul %5, %0, %cst {dimension_numbers = #tpu.dot_dimension_numbers<[0], [0], [1], [1], [0, 1, 1, 1], [], []>} : vector<16x8xf32>, vector<16x128xf32>, vector<8x128xf32> -> vector<8x128xf32>
    %7 = arith.addf %6, %3 : vector<8x128xf32>
    %c0_6 = arith.constant 0 : index
    %c0_7 = arith.constant 0 : index
    %8 = vector.load %arg5[%c0_6, %c0_7] : memref<8x128xf32, #tpu.memory_space<vmem>>, vector<8x128xf32>
    tpu.vector_store %arg5[%c0_6, %c0_7], %7 {strides = array<i32>} : memref<8x128xf32, #tpu.memory_space<vmem>>, vector<8x128xf32>,
    return
  }
  func.func @transform_0(%arg0: i32, %arg1: i32) -> (i32, i32, i32) {
    %c0_i32 = arith.constant 0 : i32
    %c0_i32_0 = arith.constant 0 : i32
    return %arg1, %c0_i32, %arg0 : i32, i32, i32
  }
  func.func @transform_1(%arg0: i32, %arg1: i32) -> (i32, i32) {
    %c0_i32 = arith.constant 0 : i32
    %c0_i32_0 = arith.constant 0 : i32
    %c0_i32_1 = arith.constant 0 : i32
    return %c0_i32, %c0_i32_0 : i32, i32
  }
  func.func @transform_2(%arg0: i32, %arg1: i32) -> (i32, i32) {
    %c0_i32 = arith.constant 0 : i32
    %c0_i32_0 = arith.constant 0 : i32
    %c0_i32_1 = arith.constant 0 : i32
    return %c0_i32, %c0_i32_0 : i32, i32
  }
  func.func @transform_3(%arg0: i32, %arg1: i32) -> (i32, i32) {
    %c0_i32 = arith.constant 0 : i32
    return %arg0, %arg1 : i32, i32
  }
}

</mosaic_0001>

<llo_original>
// kernel: tpu_custom_call.1
$region0: #{tpu_custom_call.1}
  #allocation0 [shape = 'u32[]', space=smem, size = 0x4, offset = 0x4, fixed_abs, tag = 'smem constant byte address 0x4 - core index']
  #allocation1 [shape = 'u32[144,128]{1,0:T(1,128)}', space=vmem, size = 0x12000, scoped, tag = 'internal scratch']
  %s0 = inlined_call_operand.vmem [shape: f32[2,16,8], index: 0, kind: input, shape index: {}]
  %s1 = inlined_call_operand.vmem [shape: f32[16,128], index: 1, kind: input, shape index: {}]
  %s2 = inlined_call_operand.vmem [shape: f32[1,128], index: 2, kind: input, shape index: {}]
  %s3 = inlined_call_operand.hbm [shape: f32[8,256], index: 3, kind: output, shape index: {}]
  %s4 = sld [smem:[#allocation0]]
  $region45: #{tpu_custom_call.1} parent=0
    _
  %s6 = ssub.s32 1, %s4
  %s7 = scalar_select 0, %s6, %s4
  $region1: #{tpu_custom_call.1} parent=0
    #allocation2 [shape = 'u8[8192]{0}', space=vmem, size = 0x2000, scoped, tag = 'output window, operand 0']
    #allocation3 [shape = 's32[2]{0}', space=sflag, size = 0x8, scoped, tag = 'scoped memory for tpu_custom_call.1']
    %8 = vsyncpa [#allocation3], 0
    %s9 = scalar_lea.sflag [#allocation3], 1
    %10 = vsyncpa %s9, 0
    loop: start=0, step=1, limit=4
    $region2: #{tpu_custom_call.1} parent=1 // loop_pre_header
      _
    $region3: #{tpu_custom_call.1} parent=1 // loop_header
      %s12 = sphi 0, %s16
      %p13 = scmp.ge.s32.totalorder %s12, 4
      %s19 = sphi 0, %s31
      %s20 = sphi 0, %s27
      %s21 = sphi 0, %s19
      %s22 = sphi 0, %s20
      %s23 = sphi 0, %s21
      %s24 = sphi 0, %s22
      %s36 = sphi 0, %s38
      %s39 = sphi 0, %s36
      %s40 = sphi 0, %s39
      %s56 = sphi 0, %s40
      %s60 = sphi 0, %s60
      %s62 = sphi 0, %s60
      %s63 = sphi 0, %s62
      %s77 = sphi 0, %s63
      %s81 = sphi 0, %s81
      %s83 = sphi 0, %s81
      %s84 = sphi 0, %s83
      %s98 = sphi 0, %s84
      %s106 = sphi 0, %s108
      %s109 = sphi 0, %s106
      %s110 = sphi 0, %s109
      %s126 = sphi 0, %s110
    $region4: #{tpu_custom_call.1} parent=1 // loop_header_branch
      %15 = sbr.rel (%p13) target = $region8
    $region5: #{tpu_custom_call.1} parent=1 // loop_body
      %s17 = ssub.s32 %s12, 1
      %s18 = ssub.s32 %s12, 2
      %s25 = sadd.s32 1, %s20
      %p26 = scmp.ge.s32.totalorder %s25, 2
      %s27 = scalar_select %p26, 0, %s25
      %s28 = sadd.s32 1, %s19
      %s29 = scalar_select %p26, %s28, %s19
      %p30 = scmp.ge.s32.totalorder %s29, 1
      %s31 = scalar_select %p30, 0, %s29
      %s32 = ssub.s32 %s20, %s27
      %s33 = ssub.s32 %s19, %s31
      %s34 = sor.u32 %s32, %s33
      %p35 = scmp.eq.s32.totalorder %s34, 0
      %s37 = sadd.s32 %s36, 1
      %s38 = scalar_select %p35, %s36, %s37
      %p41 = pneg %p35
      %p42 = scmp.eq.s32.totalorder %s12, 1
      %p43 = por %p41, %p42
      %p44 = scmp.ne.s32.totalorder %s36, %s39
      %p45 = scmp.eq.s32.totalorder %s12, 0
      %p46 = por %p44, %p45
      %p47 = scmp.ne.s32.totalorder %s36, %s39
      %p48 = scmp.eq.s32.totalorder %s17, 1
      %p49 = por %p47, %p48
      %p50 = scmp.ne.s32.totalorder %s39, %s40
      %p51 = scmp.eq.s32.totalorder %s17, 0
      %p52 = por %p50, %p51
      %p53 = scmp.ne.s32.totalorder %s39, %s40
      %p54 = scmp.eq.s32.totalorder %s18, 1
      %p55 = por %p53, %p54
      %p57 = scmp.ne.s32.totalorder %s40, %s56
      %p58 = scmp.eq.s32.totalorder %s18, 0
      %p59 = por %p57, %p58
      %s61 = sadd.s32 %s60, 1
      %p64 = scmp.eq.s32.totalorder %s12, 1
      %p65 = scmp.ne.s32.totalorder %s60, %s62
      %p66 = scmp.eq.s32.totalorder %s12, 0
      %p67 = por %p65, %p66
      %p68 = scmp.ne.s32.totalorder %s60, %s62
      %p69 = scmp.eq.s32.totalorder %s17, 1
      %p70 = por %p68, %p69
      %p71 = scmp.ne.s32.totalorder %s62, %s63
      %p72 = scmp.eq.s32.totalorder %s17, 0
      %p73 = por %p71, %p72
      %p74 = scmp.ne.s32.totalorder %s62, %s63
      %p75 = scmp.eq.s32.totalorder %s18, 1
      %p76 = por %p74, %p75
      %p78 = scmp.ne.s32.totalorder %s63, %s77
      %p79 = scmp.eq.s32.totalorder %s18, 0
      %p80 = por %p78, %p79
      %s82 = sadd.s32 %s81, 1
      %p85 = scmp.eq.s32.totalorder %s12, 1
      %p86 = scmp.ne.s32.totalorder %s81, %s83
      %p87 = scmp.eq.s32.totalorder %s12, 0
      %p88 = por %p86, %p87
      %p89 = scmp.ne.s32.totalorder %s81, %s83
      %p90 = scmp.eq.s32.totalorder %s17, 1
      %p91 = por %p89, %p90
      %p92 = scmp.ne.s32.totalorder %s83, %s84
      %p93 = scmp.eq.s32.totalorder %s17, 0
      %p94 = por %p92, %p93
      %p95 = scmp.ne.s32.totalorder %s83, %s84
      %p96 = scmp.eq.s32.totalorder %s18, 1
      %p97 = por %p95, %p96
      %p99 = scmp.ne.s32.totalorder %s84, %s98
      %p100 = scmp.eq.s32.totalorder %s18, 0
      %p101 = por %p99, %p100
      %s102 = ssub.s32 %s19, %s31
      %s103 = ssub.s32 %s20, %s27
      %s104 = sor.u32 %s102, %s103
      %p105 = scmp.eq.s32.totalorder %s104, 0
      %s107 = sadd.s32 %s106, 1
      %s108 = scalar_select %p105, %s106, %s107
      %p111 = pneg %p105
      %p112 = scmp.eq.s32.totalorder %s12, 1
      %p113 = por %p111, %p112
      %p114 = scmp.ne.s32.totalorder %s106, %s109
      %p115 = scmp.eq.s32.totalorder %s12, 0
      %p116 = por %p114, %p115
      %p117 = scmp.ne.s32.totalorder %s106, %s109
      %p118 = scmp.eq.s32.totalorder %s17, 1
      %p119 = por %p117, %p118
      %p120 = scmp.ne.s32.totalorder %s109, %s110
      %p121 = scmp.eq.s32.totalorder %s17, 0
      %p122 = por %p120, %p121
      %p123 = scmp.ne.s32.totalorder %s109, %s110
      %p124 = scmp.eq.s32.totalorder %s18, 1
      %p125 = por %p123, %p124
      %p127 = scmp.ne.s32.totalorder %s110, %s126
      %p128 = scmp.eq.s32.totalorder %s18, 0
      %p129 = por %p127, %p128
      %p130 = scmp.le.s32.totalorder 1, %s12
      %p131 = scmp.lt.s32.totalorder %s12, 3
      %p132 = pnand %p130, %p131
      %p133 = pneg %p132
      // Predicated region
      $region9: #{tpu_custom_call.1} parent=5 // pred_check
        _
      $region10: #{tpu_custom_call.1} parent=5 // pred_check_branch
        %135 = sbr.rel (%p132) target = $region12
      $region11: #{tpu_custom_call.1} parent=5 // pred_region
        %s136 = ssub.s32 %s12, 1
        // Predicated region
        $region13: #{tpu_custom_call.1} parent=11 // pred_check
          %p137 = pneg %p73
        $region14: #{tpu_custom_call.1} parent=11 // pred_check_branch
          %139 = sbr.rel (%p137) target = $region16
        $region15: #{tpu_custom_call.1} parent=11 // pred_region
          _
        $region16: #{tpu_custom_call.1} parent=11 // pred_fallthru
          _
        // Predicated region
        $region17: #{tpu_custom_call.1} parent=11 // pred_check
          %p140 = pneg %p94
        $region18: #{tpu_custom_call.1} parent=11 // pred_check_branch
          %142 = sbr.rel (%p140) target = $region20
        $region19: #{tpu_custom_call.1} parent=11 // pred_region
          _
        $region20: #{tpu_custom_call.1} parent=11 // pred_fallthru
          _
      $region12: #{tpu_custom_call.1} parent=5 // pred_fallthru
        _
      %p143 = scmp.lt.s32.totalorder %s12, 2
      // Predicated region
      $region21: #{tpu_custom_call.1} parent=5 // pred_check
        %p144 = pneg %p143
      $region22: #{tpu_custom_call.1} parent=5 // pred_check_branch
        %146 = sbr.rel (%p144) target = $region24
      $region23: #{tpu_custom_call.1} parent=5 // pred_region
        // Predicated region
        $region25: #{tpu_custom_call.1} parent=23 // pred_check
          %p147 = pneg %p46
        $region26: #{tpu_custom_call.1} parent=23 // pred_check_branch
          %149 = sbr.rel (%p147) target = $region28
        $region27: #{tpu_custom_call.1} parent=23 // pred_region
          %p150 = scmp.lt.s32.totalorder %s20, 1
          %s151 = scalar_select %p150, %s20, 1
          %p152 = scmp.lt.s32.totalorder %s19, 0
          %s153 = scalar_select %p152, %s19, 0
          %s154 = smul.addr %s151, 2
          %s155 = sadd.s32 %s153, %s154
          %s156 = smul.addr %s155, 8
          %s157 = scalar_lea.vmem %s0, %s156
        $region28: #{tpu_custom_call.1} parent=23 // pred_fallthru
          _
      $region24: #{tpu_custom_call.1} parent=5 // pred_fallthru
        _
      %p158 = scmp.le.s32.totalorder 1, %s12
      %p159 = scmp.lt.s32.totalorder %s12, 3
      %p160 = pnand %p158, %p159
      %p161 = pneg %p160
      // Predicated region
      $region29: #{tpu_custom_call.1} parent=5 // pred_check
        _
      $region30: #{tpu_custom_call.1} parent=5 // pred_check_branch
        %163 = sbr.rel (%p160) target = $region32
      $region31: #{tpu_custom_call.1} parent=5 // pred_region
        %s164 = ssub.s32 %s12, 1
        %p165 = scmp.lt.s32.totalorder %s22, 1
        %s166 = scalar_select %p165, %s22, 1
        %p167 = scmp.lt.s32.totalorder %s21, 0
        %s168 = scalar_select %p167, %s21, 0
        %s169 = smul.addr %s166, 2
        %s170 = sadd.s32 %s168, %s169
        %s171 = smul.addr %s170, 8
        %s172 = scalar_lea.vmem %s0, %s171
        %p173 = pneg %p52
        %p174 = pneg %p49
        %p175 = pneg %p73
        %p176 = pneg %p70
        %p177 = pneg %p94
        %p178 = pneg %p91
        %p179 = pneg %p122
        %p180 = pneg %p119
        %s181 = sand.u32 %s109, 1
        %s182 = scalar_lea.sflag [#allocation3], %s181
        %s183 = sand.u32 %s109, 1
        %s184 = smul.addr %s183, 8
        %s185 = scalar_lea.vmem [#allocation2], %s184
        %p186 = scmp.lt.s32.totalorder %s22, 1
        %s187 = scalar_select %p186, %s22, 1
        %p188 = scmp.lt.s32.totalorder %s21, 0
        %s189 = scalar_select %p188, %s21, 0
        %s190 = smul.addr %s187, 2
        %s191 = sadd.s32 %s189, %s190
        %s192 = smul.addr %s191, 8
        %s193 = scalar_lea.vmem %s0, %s192
        %v194 = vld [vmem:[%s1] sm:$0xff]
        %v195 = vld [vmem:[%s1 + $0x8] sm:$0xff]
        %v196 = vld [vmem:[%s2] sm:$0x1]
        %v198 = vlaneseq
        %v199 = vshrl.u32 %v198, 7
        %v200 = vsub.s32 0, %v199
        %v201 = vrot.slane %v196, %v200
        %v203 = vld [vmem:[%s193] sm:$0xff]
        %v204 = vld [vmem:[%s193 + $0x8] sm:$0xff]
        %205 = vxpose.xlu0.b32.start [1/16] %v203, 128
        %206 = vxpose.xlu0.b32.cont [2/16] %v204, 128
        %207 = vxpose.xlu0.b32.cont [3/16] 0.0, 128
        %208 = vxpose.xlu0.b32.cont [4/16] 0.0, 128
        %209 = vxpose.xlu0.b32.cont [5/16] 0.0, 128
        %210 = vxpose.xlu0.b32.cont [6/16] 0.0, 128
        %211 = vxpose.xlu0.b32.cont [7/16] 0.0, 128
        %212 = vxpose.xlu0.b32.cont [8/16] 0.0, 128
        %213 = vxpose.xlu0.b32.cont [9/16] 0.0, 128
        %214 = vxpose.xlu0.b32.cont [10/16] 0.0, 128
        %215 = vxpose.xlu0.b32.cont [11/16] 0.0, 128
        %216 = vxpose.xlu0.b32.cont [12/16] 0.0, 128
        %217 = vxpose.xlu0.b32.cont [13/16] 0.0, 128
        %218 = vxpose.xlu0.b32.cont [14/16] 0.0, 128
        %219 = vxpose.xlu0.b32.cont [15/16] 0.0, 128
        %220 = vxpose.xlu0.b32.end [16/16] 0.0, 128
        %v221 = vpop.trf.xlu0
        %v222 = vpop.trf.xlu0
        %v223 = vpop.trf.xlu0
        %v224 = vpop.trf.xlu0
        %v225 = vpop.trf.xlu0
        %v226 = vpop.trf.xlu0
        %v227 = vpop.trf.xlu0
        %v228 = vpop.trf.xlu0
        %v229 = vpop.trf.xlu0
        %v230 = vpop.trf.xlu0
        %v231 = vpop.trf.xlu0
        %v232 = vpop.trf.xlu0
        %v233 = vpop.trf.xlu0
        %v234 = vpop.trf.xlu0
        %v235 = vpop.trf.xlu0
        %v236 = vpop.trf.xlu0
        %vm237 = vcmask 130048
        %v239 = vsel %vm237, %v221, 0
        %241 = vmatprep.subr.mxu0 0.0
        %242 = vmatpush1.msra.mxu0 %v194
        %243 = vmatprep.subr.mxu0 0.0
        %244 = vmatpush1.msra.mxu0 %v195
        %245 = vmatprep.subr.mxu0 0.0
        %246 = vmatpush1.msra.mxu0 0.0
        %247 = vmatprep.subr.mxu0 0.0
        %248 = vmatpush1.msra.mxu0 0.0
        %249 = vmatprep.subr.mxu0 0.0
        %250 = vmatpush1.msra.mxu0 0.0
        %251 = vmatprep.subr.mxu0 0.0
        %252 = vmatpush1.msra.mxu0 0.0
        %253 = vmatprep.subr.mxu0 0.0
        %254 = vmatpush1.msra.mxu0 0.0
        %255 = vmatprep.subr.mxu0 0.0
        %256 = vmatpush1.msra.mxu0 0.0
        %257 = vmatprep.subr.mxu0 0.0
        %258 = vmatpush1.msra.mxu0 0.0
        %259 = vmatprep.subr.mxu0 0.0
        %260 = vmatpush1.msra.mxu0 0.0
        %261 = vmatprep.subr.mxu0 0.0
        %262 = vmatpush1.msra.mxu0 0.0
        %263 = vmatprep.subr.mxu0 0.0
        %264 = vmatpush1.msra.mxu0 0.0
        %265 = vmatprep.subr.mxu0 0.0
        %266 = vmatpush1.msra.mxu0 0.0
        %267 = vmatprep.subr.mxu0 0.0
        %268 = vmatpush1.msra.mxu0 0.0
        %269 = vmatprep.subr.mxu0 0.0
        %270 = vmatpush1.msra.mxu0 0.0
        %271 = vmatprep.subr.mxu0 0.0
        %272 = vmatpush1.msra.mxu0 0.0
        %273 = vmatprep.subr.mxu0 0.0
        %274 = vmatpush1.msra.mxu0 0.0
        %275 = vmatprep.subr.mxu0 0.0
        %276 = vmatpush1.msra.mxu0 0.0
        %277 = vmatprep.subr.mxu0 0.0
        %278 = vmatpush1.msra.mxu0 0.0
        %279 = vmatprep.subr.mxu0 0.0
        %280 = vmatpush1.msra.mxu0 0.0
        %281 = vmatprep.subr.mxu0 0.0
        %282 = vmatpush1.msra.mxu0 0.0
        %283 = vmatprep.subr.mxu0 0.0
        %284 = vmatpush1.msra.mxu0 0.0
        %285 = vmatprep.subr.mxu0 0.0
        %286 = vmatpush1.msra.mxu0 0.0
        %287 = vmatprep.subr.mxu0 0.0
        %288 = vmatpush1.msra.mxu0 0.0
        %289 = vmatprep.subr.mxu0 0.0
        %290 = vmatpush1.msra.mxu0 0.0
        %291 = vmatprep.subr.mxu0 0.0
        %292 = vmatpush1.msra.mxu0 0.0
        %293 = vmatprep.subr.mxu0 0.0
        %294 = vmatpush1.msra.mxu0 0.0
        %295 = vmatprep.subr.mxu0 0.0
        %296 = vmatpush1.msra.mxu0 0.0
        %297 = vmatprep.subr.mxu0 0.0
        %298 = vmatpush1.msra.mxu0 0.0
        %299 = vmatprep.subr.mxu0 0.0
        %300 = vmatpush1.msra.mxu0 0.0
        %301 = vmatprep.subr.mxu0 0.0
        %302 = vmatpush1.msra.mxu0 0.0
        %303 = vmatprep.subr.mxu0 0.0
        %304 = vmatpush1.msra.mxu0 0.0
        %305 = vmatprep.mubr.f32.mxu0 0.0
        %306 = vmatmul.mubr.f32.gmra.mrb[0].mxu0 %v239
        %v307 = vpop.f32.mrb[0].mxu0
        %v308 = vadd.f32 %v201, %v307
        %v309 = vpop.f32.mrb[0].mxu0
        %310 = vdwg.mxu0
        %311 = vst [vmem:[%s185] sm:$0xff] %v308
        %s312 = sand.u32 %s109, 1
        %s313 = scalar_lea.sflag [#allocation3], %s312
        %s314 = sand.u32 %s109, 1
        %s315 = smul.addr %s314, 8
        %s316 = scalar_lea.vmem [#allocation2], %s315
        // Predicated region
        $region33: #{tpu_custom_call.1} parent=31 // pred_check
          %p317 = pneg %p119
        $region34: #{tpu_custom_call.1} parent=31 // pred_check_branch
          %319 = sbr.rel (%p317) target = $region36
        $region35: #{tpu_custom_call.1} parent=31 // pred_region
          %s321 = ssub.s32 128, 128
          %322 = vsyncadd %s313, %s321
          %s323 = smul.addr %s21, 2
          %s324 = sadd.s32 %s22, %s323
          %s325 = smul.addr %s324, 128
          %s326 = scalar_lea.hbm %s3, %s325
          %s328 = sshll.u32 %s316, 4
          %s329 = int_to_ptr.vmem [resolvable:$true] %s328
          %331 = dma.vmem_to_hbm [thread:$0]  %s329, 128, %s326, %s313
        $region36: #{tpu_custom_call.1} parent=31 // pred_fallthru
          _
      $region32: #{tpu_custom_call.1} parent=5 // pred_fallthru
        _
      %p332 = scmp.le.s32.totalorder 2, %s12
      // Predicated region
      $region37: #{tpu_custom_call.1} parent=5 // pred_check
        %p333 = pneg %p332
      $region38: #{tpu_custom_call.1} parent=5 // pred_check_branch
        %335 = sbr.rel (%p333) target = $region40
      $region39: #{tpu_custom_call.1} parent=5 // pred_region
        %s336 = ssub.s32 %s12, 2
        // Predicated region
        $region41: #{tpu_custom_call.1} parent=39 // pred_check
          %p337 = pneg %p125
        $region42: #{tpu_custom_call.1} parent=39 // pred_check_branch
          %339 = sbr.rel (%p337) target = $region44
        $region43: #{tpu_custom_call.1} parent=39 // pred_region
          %s340 = sand.u32 %s110, 1
          %s341 = scalar_lea.sflag [#allocation3], %s340
          %s342 = sand.u32 %s110, 1
          %s343 = smul.addr %s342, 8
          %s344 = scalar_lea.vmem [#allocation2], %s343
          %345 = dma.done %s341, 128
        $region44: #{tpu_custom_call.1} parent=39 // pred_fallthru
          _
      $region40: #{tpu_custom_call.1} parent=5 // pred_fallthru
        _
    $region6: #{tpu_custom_call.1} parent=1 // loop_footer
      %s16 = sadd.s32 1, %s12
    $region7: #{tpu_custom_call.1} parent=1 // loop_footer_branch
      %11 = sbr.rel target = $region3
    $region8: #{tpu_custom_call.1} parent=1 // loop_exit
      _
    %346 = vsyncpa [#allocation3], 1
    %s347 = scalar_lea.sflag [#allocation3], 1
    %348 = vsyncpa %s347, 1

</llo_original>
